<compile_context>
chip_gen: v5e
topology: v5e:2x2
jax: 0.10.0
libtpu: 0.0.40
codegen_flags: <defaults>
</compile_context>

<pallas_src>
import functools
import math

import numpy as np
import jax
import jax.numpy as jnp
from jax.experimental import pallas as pl
from jax.experimental.pallas import tpu as pltpu


# ----------------------------------------------------------------------------
# One-time hardware probe: pltpu.roll shift convention (strict known-answer check).
# ----------------------------------------------------------------------------
def _roll_probe_kernel(x_ref, o_ref):
    o_ref[...] = pltpu.roll(x_ref[...], 1, axis=1)


@functools.lru_cache(maxsize=None)
def _roll_matches_numpy():
    """True iff pltpu.roll(x, s)[i] == x[(i - s) % n] (np.roll semantics)."""
    x = jnp.broadcast_to(jnp.arange(128, dtype=jnp.float32)[None, :], (8, 128))
    y = pl.pallas_call(
        _roll_probe_kernel,
        out_shape=jax.ShapeDtypeStruct((8, 128), jnp.float32),
    )(x)
    v = float(y[0, 0])
    if v == 127.0:
        return True
    if v == 1.0:
        return False
    raise AssertionError(f"unexpected pltpu.roll semantics (probe value {v})")


# ----------------------------------------------------------------------------
# Pallas kernel: packed real-valued statevector simulation + post-processing.
# ----------------------------------------------------------------------------
def _qgen_kernel(c_ref, s_ref, out_ref, *, n_qubits, n_layers, d_keep, seg_len,
                 roll_np):
    # c_ref / s_ref : (n_gates, Rp, L)  cos(theta/2) / sin(theta/2), gate
    #                                   g = step*n_qubits + wire, each circuit's
    #                                   value already broadcast over its D lanes
    # out_ref       : (Rp, L)           lane-dense packed output; segment s of packed
    #                                   row p holds circuit r = p*PACK + s
    Rp, L = out_ref.shape
    D = seg_len
    Q = n_qubits

    lane = jax.lax.broadcasted_iota(jnp.int32, (Rp, L), 1)
    d_idx = lane & (D - 1)                       # basis index within each D-lane segment

    def bit_set(v):
        # recomputed at each use (2 cheap VALU ops) so regalloc can rematerialize
        # instead of keeping Q boolean vreg sets live across the unrolled circuit
        return (d_idx & v) != 0

    def xor_partner(x, v, negate_clear=False):
        # x[i ^ v] within every D-lane segment: two XLU rolls + one VPU select.
        # The select also masks out the only lanes where a full-width roll wraps,
        # so plain 128-lane rolls are exact even in the packed layout.
        sh_set, sh_clr = (v, L - v) if roll_np else (L - v, v)
        at_set = pltpu.roll(x, sh_set, axis=1)   # x[i - v], valid where bit == 1
        at_clr = pltpu.roll(x, sh_clr, axis=1)   # x[i + v], valid where bit == 0
        return jnp.where(bit_set(v), at_set, -at_clr if negate_clear else at_clr)

    # |0...0> in every segment
    state = jnp.where(d_idx == 0, 1.0, 0.0).astype(jnp.float32)

    # TODO(synk): for very deep circuits convert this static unroll into a
    #             lax.fori_loop over layers to bound vreg live ranges; at small
    #             n_layers the unroll is optimal.
    for step in range(n_layers + 1):
        for q in range(Q):                       # RY on wire q (PennyLane: wire 0 = MSB)
            v = 1 << (Q - 1 - q)
            c = c_ref[step * Q + q]              # (Rp, L), lane-broadcast per circuit
            s = s_ref[step * Q + q]
            # |0>: c*a0 - s*a1 ; |1>: s*a0 + c*a1  (signed partner)
            state = c * state + s * xor_partner(state, v, negate_clear=True)
        if step > 0:                             # no entangler on the encoding step
            for w in range(Q - 1):               # CNOT(w, w+1) chain
                cv = 1 << (Q - 1 - w)
                tv = 1 << (Q - 2 - w)
                state = jnp.where(bit_set(cv), xor_partner(state, tv), state)

    # qml.probs over all wires (state is real for this ansatz)
    probs = state * state

    # partial_measure: post-select ancillas in |0>, rescale to [-1, 1].
    # NOTE: (kept/sum)/max(kept/sum) == kept/max(kept) algebraically, so the sum
    # normalisation stage of the reference cancels and is omitted here.
    kept = jnp.where(d_idx < d_keep, probs, 0.0)

    # per-segment max over the kept lanes only: butterfly over the low log2(d_keep)
    # bits (ancilla bits skipped; lanes >= d_keep are discarded by the wrapper)
    seg_max = kept
    v = 1
    while v < d_keep:
        seg_max = jnp.maximum(seg_max, xor_partner(seg_max, v))
        v *= 2

    seg_max = jnp.maximum(seg_max, 1e-30)        # ancilla lanes see 0: avoid 0*inf NaN
    inv = pl.reciprocal(seg_max, approx=True)    # EUP slot is otherwise idle
    inv = inv * (2.0 - seg_max * inv)            # one Newton step -> ~f32 accuracy
    out_ref[...] = 2.0 * kept * inv - 1.0        # (x - 0.5) / 0.5 folded


# ----------------------------------------------------------------------------
# Wrapper: packs cos/sin into the lane layout, calls pallas_call, reassembles the
# NCHW image exactly as the PyTorch forward does.
# ----------------------------------------------------------------------------
def quantum_generator_forward(x, params, *, image_shape, n_ancillas, n_layers):
    B, n_qubits = x.shape
    G = params.shape[0]                               # n_sub_generators
    Q = n_qubits
    D = 2 ** Q
    d_keep = 2 ** (Q - n_ancillas)
    ppp = image_shape[2] ** 2 // G                    # pixels_per_patch
    n_gates = (n_layers + 1) * Q
    R = G * B                                         # independent circuit evaluations

    # lane packing: PACK circuits of D amplitudes per 128-lane vreg row
    PACK = 128 // D if D < 128 else 1
    L = PACK * D
    Rp = pl.cdiv(R, PACK)                             # packed rows
    if Rp <= 8:
        rp_tile = Rp                                  # single full-extent block
    else:
        # multiple-of-8 tiles; cap at 32 (vreg pressure) and keep >= ~4 grid blocks
        # when possible so "parallel" shards across TensorCores and DMA pipelines.
        rp_tile = 8
        while rp_tile * 2 <= 32 and rp_tile * 2 * 4 <= Rp:
            rp_tile *= 2
    n_blocks = pl.cdiv(Rp, rp_tile)
    rp_pad = n_blocks * rp_tile
    r_pad = rp_pad * PACK

    # per-circuit gate angles: row r = subgen*B + batch, gate g = step*Q + wire
    lat = jnp.broadcast_to(x[None, :, None, :], (G, B, 1, Q))
    lay = jnp.broadcast_to(params.reshape(G, 1, n_layers, Q), (G, B, n_layers, Q))
    ang = jnp.concatenate([lat, lay], axis=2).reshape(R, n_gates).astype(jnp.float32)

    # hoist transcendentals out of the kernel: cos/sin on the compact array
    cos_c = jnp.cos(0.5 * ang)
    sin_c = jnp.sin(0.5 * ang)
    cos_c = jnp.pad(cos_c, ((0, r_pad - R), (0, 0)))  # padded rows -> zero state, discarded
    sin_c = jnp.pad(sin_c, ((0, r_pad - R), (0, 0)))

    def lane_broadcast(a):                            # (r_pad, n_gates) -> (n_gates, rp_pad, L)
        a = a.reshape(rp_pad, PACK, n_gates).transpose(2, 0, 1)
        a = jnp.broadcast_to(a[..., None], (n_gates, rp_pad, PACK, D))
        return a.reshape(n_gates, rp_pad, L)

    cos_l = lane_broadcast(cos_c)
    sin_l = lane_broadcast(sin_c)

    kernel = functools.partial(
        _qgen_kernel, n_qubits=Q, n_layers=n_layers, d_keep=d_keep,
        seg_len=D, roll_np=_roll_matches_numpy())

    packed = pl.pallas_call(
        kernel,
        out_shape=jax.ShapeDtypeStruct((rp_pad, L), jnp.float32),
        grid=(n_blocks,),
        in_specs=[pl.BlockSpec((n_gates, rp_tile, L), lambda i: (0, i, 0)),
                  pl.BlockSpec((n_gates, rp_tile, L), lambda i: (0, i, 0))],
        out_specs=pl.BlockSpec((rp_tile, L), lambda i: (i, 0)),
        compiler_params=pltpu.CompilerParams(dimension_semantics=("parallel",)),
    )(cos_l, sin_l)

    # unpack: packed row p / segment s  ->  circuit row r = p*PACK + s
    patches = packed.reshape(rp_pad * PACK, D)[:R, :ppp]

    # forward(): per-subgen patches stacked over batch, concatenated along dim 1,
    # then view(batch, *image_shape)  (NCHW)
    out = patches.reshape(G, B, ppp).transpose(1, 0, 2).reshape(B, G * ppp)
    return out.reshape((B,) + tuple(image_shape))


# ----------------------------------------------------------------------------
# Pure-JAX reference (same math as the PyTorch module, no Pallas) for correctness
# ----------------------------------------------------------------------------
def _reference_forward(x, params, *, image_shape, n_ancillas, n_layers):
    B, n_qubits = x.shape
    G = params.shape[0]
    D = 2 ** n_qubits
    d_keep = 2 ** (n_qubits - n_ancillas)
    ppp = image_shape[2] ** 2 // G

    def one_circuit(latent, subgen_params):
        state = jnp.zeros((D,), jnp.float32).at[0].set(1.0)
        state = state.reshape((2,) * n_qubits)

        def ry(st, theta, wire):
            st = jnp.moveaxis(st, wire, 0).reshape(2, -1)
            c, s = jnp.cos(theta / 2), jnp.sin(theta / 2)
            st = jnp.stack([c * st[0] - s * st[1], s * st[0] + c * st[1]])
            return jnp.moveaxis(st.reshape((2,) * n_qubits), 0, wire)

        def cnot(st, c_w, t_w):
            st = jnp.moveaxis(st, (c_w, t_w), (0, 1))
            st = st.at[1].set(st[1, ::-1])
            return jnp.moveaxis(st, (0, 1), (c_w, t_w))

        for w in range(n_qubits):
            state = ry(state, latent[w], w)
        for l in range(n_layers):
            for w in range(n_qubits):
                state = ry(state, subgen_params[l, w], w)
            for w in range(n_qubits - 1):
                state = cnot(state, w, w + 1)
        probs = (state.reshape(-1) ** 2)[:d_keep]
        probs = probs / jnp.sum(probs)
        return ((probs / jnp.max(probs) - 0.5) / 0.5)[:ppp]

    rows = []
    for g in range(G):
        for b in range(B):
            rows.append(one_circuit(x[b], params[g]))
    patches = jnp.stack(rows).reshape(G, B, ppp).transpose(1, 0, 2).reshape(B, -1)
    return patches.reshape((B,) + tuple(image_shape))


if __name__ == "__main__":
    # small config consistent with the module: image 8x8, 4 sub-generators,
    # 5 qubits, 1 ancilla -> pixels_per_patch = 64/4 = 16 = 2**(5-1)
    image_shape = (1, 8, 8)
    n_qubits = 5
    n_ancillas = 1
    n_sub_generators = 4
    n_layers = 2
    batch = 2

    key = jax.random.PRNGKey(0)
    kx, kp = jax.random.split(key)
    # latent vector: one RY angle per qubit
    x = (jax.random.uniform(kx, (batch, n_qubits), jnp.float32) * math.pi / 2)
    # torch.rand-style params in [0, 1): one per (subgen, layer, qubit)
    params = jax.random.uniform(kp, (n_sub_generators, n_layers, n_qubits), jnp.float32)

    out = quantum_generator_forward(x, params, image_shape=image_shape,
                                    n_ancillas=n_ancillas, n_layers=n_layers)
    out = jax.block_until_ready(out)

    ref = _reference_forward(x, params, image_shape=image_shape,
                             n_ancillas=n_ancillas, n_layers=n_layers)
    np.testing.assert_allclose(np.asarray(out), np.asarray(ref), rtol=2e-5, atol=2e-5)
    assert out.shape == (batch,) + image_shape and out.dtype == jnp.float32

    print("KERNEL_OK")
</pallas_src>

<mosaic_0001>
module attributes {stable_mosaic.version = 11 : i64} {
  func.func @_roll_probe_kernel(%arg0: memref<8x128xf32, #tpu.memory_space<vmem>>, %arg1: memref<8x128xf32, #tpu.memory_space<vmem>>) attributes {dimension_semantics = [], scalar_prefetch = 0 : i64, scratch_operands = 0 : i64, tpu.core_type = #tpu.core_type<tc>} {
    %c0 = arith.constant 0 : index
    %c0_0 = arith.constant 0 : index
    %0 = vector.load %arg0[%c0, %c0_0] : memref<8x128xf32, #tpu.memory_space<vmem>>, vector<8x128xf32>
    %c1_i32 = arith.constant 1 : i32
    %1 = tpu.dynamic_rotate %0 by %c1_i32 dim 1 : vector<8x128xf32>, i32 -> vector<8x128xf32>
    %c0_1 = arith.constant 0 : index
    %c0_2 = arith.constant 0 : index
    %2 = vector.load %arg1[%c0_1, %c0_2] : memref<8x128xf32, #tpu.memory_space<vmem>>, vector<8x128xf32>
    tpu.vector_store %arg1[%c0_1, %c0_2], %1 {strides = array<i32>} : memref<8x128xf32, #tpu.memory_space<vmem>>, vector<8x128xf32>,
    return
  }
}

</mosaic_0001>

<llo_original>
// kernel: tpu_custom_call.1
$region0: #{tpu_custom_call.1}
  #allocation0 [shape = 'u32[]', space=smem, size = 0x4, offset = 0x4, fixed_abs, tag = 'smem constant byte address 0x4 - core index']
  #allocation1 [shape = 'u32[72,128]{1,0:T(1,128)}', space=vmem, size = 0x9000, scoped, tag = 'internal scratch']
  %s0 = inlined_call_operand.hbm [shape: f32[8,128], index: 0, kind: input, shape index: {}]
  %s1 = inlined_call_operand.hbm [shape: f32[8,128], index: 1, kind: output, shape index: {}]
  %s2 = sld [smem:[#allocation0]]
  $region18: #{tpu_custom_call.1} parent=0
    _
  %s4 = ssub.s32 1, %s2
  %s5 = scalar_select 0, %s4, %s2
  $region1: #{tpu_custom_call.1} parent=0
    #allocation2 [shape = 'u8[4096]{0}', space=vmem, size = 0x1000, scoped, tag = 'input window, operand 0, single buffered']
    #allocation3 [shape = 's32[1]{0}', space=sflag, size = 0x4, scoped, tag = 'scoped memory for tpu_custom_call.1']
    #allocation4 [shape = 's32[1]{0}', space=sflag, size = 0x4, scoped, tag = 'scoped memory for tpu_custom_call.1']
    #allocation5 [shape = 'u8[4096]{0}', space=vmem, size = 0x1000, scoped, tag = 'output window, operand 0, single buffered']
    %6 = vsyncpa [#allocation3], 0
    %7 = vsyncpa [#allocation4], 0
    // Predicated region
    $region2: #{tpu_custom_call.1} parent=1 // pred_check
      _
    $region3: #{tpu_custom_call.1} parent=1 // pred_check_branch
      %9 = sbr.rel (0) target = $region5
    $region4: #{tpu_custom_call.1} parent=1 // pred_region
      %11 = vsyncadd [#allocation3], 0
      %s13 = sshll.u32 %s0, 4
      %s14 = int_to_ptr.hbm [resolvable:$true] %s13
      %s15 = sshll.u32 [#allocation2], 4
      %s16 = int_to_ptr.vmem [resolvable:$true] %s15
      %18 = dma.hbm_to_vmem [thread:$0]  %s14, 128, %s16, [#allocation3]
    $region5: #{tpu_custom_call.1} parent=1 // pred_fallthru
      _
    // Predicated region
    $region6: #{tpu_custom_call.1} parent=1 // pred_check
      _
    $region7: #{tpu_custom_call.1} parent=1 // pred_check_branch
      %20 = sbr.rel (0) target = $region9
    $region8: #{tpu_custom_call.1} parent=1 // pred_region
      %22 = dma.done [#allocation3], 128
    $region9: #{tpu_custom_call.1} parent=1 // pred_fallthru
      _
    %v23 = vld [vmem:[#allocation2] sm:$0xff]
    %24 = vrot.lane.b32.xlu0 %v23, 1
    %v25 = vpop.permute.xlu0 %24
    %26 = vst [vmem:[#allocation5] sm:$0xff] %v25
    // Predicated region
    $region10: #{tpu_custom_call.1} parent=1 // pred_check
      _
    $region11: #{tpu_custom_call.1} parent=1 // pred_check_branch
      %28 = sbr.rel (0) target = $region13
    $region12: #{tpu_custom_call.1} parent=1 // pred_region
      %30 = vsyncadd [#allocation4], 0
      %s32 = sshll.u32 [#allocation5], 4
      %s33 = int_to_ptr.vmem [resolvable:$true] %s32
      %s34 = sshll.u32 %s1, 4
      %s35 = int_to_ptr.hbm [resolvable:$true] %s34
      %37 = dma.vmem_to_hbm [thread:$0]  %s33, 128, %s35, [#allocation4]
    $region13: #{tpu_custom_call.1} parent=1 // pred_fallthru
      _
    // Predicated region
    $region14: #{tpu_custom_call.1} parent=1 // pred_check
      _
    $region15: #{tpu_custom_call.1} parent=1 // pred_check_branch
      %39 = sbr.rel (0) target = $region17
    $region16: #{tpu_custom_call.1} parent=1 // pred_region
      %41 = dma.done [#allocation4], 128
    $region17: #{tpu_custom_call.1} parent=1 // pred_fallthru
      _
    %42 = vsyncpa [#allocation3], 1
    %43 = vsyncpa [#allocation4], 1

</llo_original>
